<compile_context>
chip_gen: v7x
topology: tpu7x:2x2x1
jax: 0.10.0
libtpu: 0.0.40
codegen_flags: <defaults>
</compile_context>

<pallas_src>
import functools

import jax
import jax.numpy as jnp
from jax import lax
from jax.experimental import pallas as pl
from jax.experimental.pallas import tpu as pltpu


TC = 8  # timesteps processed per grid step


# ----------------------------- Pallas kernels ------------------------------ #

def _input_proj_kernel(x_ref, w_ref, b_ref, o_ref):
    # Hoisted GRU input projection: [rows, D] @ [D, 3H] + [1, 3H], rows = T*B.
    o_ref[...] = (
        jnp.dot(x_ref[...], w_ref[...], preferred_element_type=jnp.float32)
        + b_ref[...]
    )


def input_projection(x_flat, w, b, row_block):
    rows, d = x_flat.shape
    out_dim = w.shape[1]
    grid_spec = pltpu.PrefetchScalarGridSpec(
        num_scalar_prefetch=0,
        grid=(rows // row_block,),
        in_specs=[
            pl.BlockSpec((row_block, d), lambda i: (i, 0)),
            pl.BlockSpec((d, out_dim), lambda i: (0, 0)),
            pl.BlockSpec((1, out_dim), lambda i: (0, 0)),
        ],
        out_specs=pl.BlockSpec((row_block, out_dim), lambda i: (i, 0)),
    )
    return pl.pallas_call(
        _input_proj_kernel,
        out_shape=jax.ShapeDtypeStruct((rows, out_dim), jnp.float32),
        grid_spec=grid_spec,
        compiler_params=pltpu.CompilerParams(dimension_semantics=("parallel",)),
    )(x_flat, w, b)


def _decoder_score_kernel(
    gold_ref, gates_ref,
    whh_ref, bhh_ref, wout_ref, bout_ref,
    enc_ref, wb_ref, bb_ref,
    out_ref, h_scr,
    *, pad_id,
):
    c = pl.program_id(0)

    @pl.when(c == 0)
    def _():
        # Fused MLPBridger init: h0 = enc_flat @ Wb + bb.  Output block index is
        # constant across the grid, so out_ref is the VMEM-resident accumulator.
        h_scr[...] = (
            jnp.dot(enc_ref[...], wb_ref[...], preferred_element_type=jnp.float32)
            + bb_ref[...]
        )
        out_ref[...] = jnp.zeros_like(out_ref)

    H = whh_ref.shape[0]
    V = wout_ref.shape[1]
    B = h_scr.shape[0]
    Tc = gates_ref.shape[0]

    whh = whh_ref[...]      # [H, 3H]  fused (r|z|n)
    bhh = bhh_ref[...]      # [1, 3H]
    wout = wout_ref[...]    # [H, V]
    bout = bout_ref[...]    # [1, V]
    lane_ids = lax.broadcasted_iota(jnp.int32, (B, V), 1)   # hoisted out of the loop

    def step(t, carry):
        h, acc = carry
        g_in = gates_ref[t]                                      # [B, 3H] precomputed
        g_h = jnp.dot(h, whh, preferred_element_type=jnp.float32) + bhh   # [B, 3H]

        # PyTorch GRU semantics (gate order r, z, n; r applied to the hidden n-term).
        r = jax.nn.sigmoid(g_in[:, 0:H] + g_h[:, 0:H])
        z = jax.nn.sigmoid(g_in[:, H:2 * H] + g_h[:, H:2 * H])
        n = jnp.tanh(g_in[:, 2 * H:3 * H] + r * g_h[:, 2 * H:3 * H])
        h_new = (1.0 - z) * n + z * h

        # NLL contribution: gold_logit - logsumexp (no full log_softmax / one-hot).
        logits = jnp.dot(h_new, wout, preferred_element_type=jnp.float32) + bout  # [B, V]
        m = jnp.max(logits, axis=-1, keepdims=True)
        lse = m + jnp.log(jnp.sum(jnp.exp(logits - m), axis=-1, keepdims=True))   # [B, 1]

        gold = gold_ref[t]                                                         # [B, 1] int32
        gold_logit = jnp.sum(
            jnp.where(lane_ids == gold, logits, 0.0), axis=-1, keepdims=True)      # [B, 1]
        padmask = (gold != pad_id).astype(jnp.float32)                             # [B, 1]
        acc = acc + (gold_logit - lse) * padmask
        return h_new, acc

    acc0 = jnp.zeros((B, 1), jnp.float32)
    h_fin, acc_fin = lax.fori_loop(0, Tc, step, (h_scr[...], acc0), unroll=True)
    h_scr[...] = h_fin
    out_ref[...] += acc_fin


def decoder_score(gold_t3, gates_t, enc_flat, whh, bhh, wout, bout, wb, bb, pad_id, tc):
    """Returns per-batch sum of gold-token log-probs, shape [B, 1]."""
    t_pad, B, G3 = gates_t.shape
    H = whh.shape[0]
    V = wout.shape[1]
    Eenc = enc_flat.shape[-1]

    grid_spec = pltpu.PrefetchScalarGridSpec(
        num_scalar_prefetch=0,
        grid=(t_pad // tc,),
        in_specs=[
            pl.BlockSpec((tc, B, 1), lambda c: (c, 0, 0)),    # gold token ids
            pl.BlockSpec((tc, B, G3), lambda c: (c, 0, 0)),   # precomputed input gates
            pl.BlockSpec((H, G3), lambda c: (0, 0)),          # fused Whh
            pl.BlockSpec((1, G3), lambda c: (0, 0)),          # fused bhh
            pl.BlockSpec((H, V), lambda c: (0, 0)),           # Wout
            pl.BlockSpec((1, V), lambda c: (0, 0)),           # bout
            pl.BlockSpec((B, Eenc), lambda c: (0, 0)),        # enc_flat (bridger input)
            pl.BlockSpec((Eenc, H), lambda c: (0, 0)),        # Wb (bridger)
            pl.BlockSpec((1, H), lambda c: (0, 0)),           # bb (bridger)
        ],
        out_specs=pl.BlockSpec((B, 1), lambda c: (0, 0)),
        scratch_shapes=[pltpu.VMEM((B, H), jnp.float32)],     # GRU hidden state
    )
    return pl.pallas_call(
        functools.partial(_decoder_score_kernel, pad_id=pad_id),
        out_shape=jax.ShapeDtypeStruct((B, 1), jnp.float32),
        grid_spec=grid_spec,
        compiler_params=pltpu.CompilerParams(dimension_semantics=("arbitrary",)),
    )(gold_t3, gates_t, whh, bhh, wout, bout, enc_flat, wb, bb)


# ------------------------------ Model wrapper ------------------------------ #

def rnn_predictor_forward(hidden, tgt_var, params, pad_id, div_by_word=False):
    """Mirrors RNNPredictor.forward: -sum_b score_b (score = teacher-forced log-lik)."""
    B = tgt_var.shape[0]

    # Fused weight layouts (in practice prepacked once, not per call).
    wih = jnp.concatenate([params["wir"], params["wiz"], params["win"]], axis=1)  # [D, 3H]
    bih = jnp.concatenate([params["bir"], params["biz"], params["bin"]], axis=1)  # [1, 3H]
    whh = jnp.concatenate([params["whr"], params["whz"], params["whn"]], axis=1)  # [H, 3H]
    bhh = jnp.concatenate([params["bhr"], params["bhz"], params["bhn"]], axis=1)  # [1, 3H]

    # MLPBridger input: [enc_layers, B, E] -> [B, enc_layers*E]  (linear done in-kernel).
    enc_flat = jnp.transpose(hidden, (1, 0, 2)).reshape(B, -1)

    # Teacher forcing: inputs tgt[:, :-1] predict gold tgt[:, 1:].
    emb = params["embed"][tgt_var[:, :-1]]                      # [B, T, D]
    emb_t = jnp.transpose(emb, (1, 0, 2)).astype(jnp.float32)   # [T, B, D]
    gold_t = jnp.transpose(tgt_var[:, 1:], (1, 0))              # [T, B]

    T, _, D = emb_t.shape
    t_pad = ((T + TC - 1) // TC) * TC
    if t_pad != T:  # pad T to a multiple of the chunk size; padded steps are masked out
        emb_t = jnp.pad(emb_t, ((0, t_pad - T), (0, 0), (0, 0)))
        gold_t = jnp.pad(gold_t, ((0, t_pad - T), (0, 0)), constant_values=pad_id)
    gold_t3 = gold_t.astype(jnp.int32)[..., None]               # [T_pad, B, 1]

    # Hoisted input-to-hidden projection: one big MXU-friendly matmul over all steps.
    gates_flat = input_projection(emb_t.reshape(t_pad * B, D), wih, bih, row_block=TC * B)
    gates_t = gates_flat.reshape(t_pad, B, -1)                  # [T_pad, B, 3H]

    scores = decoder_score(
        gold_t3, gates_t, enc_flat,
        whh, bhh, params["wout"], params["bout"],
        params["wb"], params["bb"], pad_id, TC,
    )[:, 0]                                                     # [B]

    if div_by_word:
        tgt_len = (tgt_var != pad_id).sum(-1).astype(jnp.float32)
        scores = scores / (tgt_len + 1e-9)
    return -jnp.sum(scores)


# ------------------------------ Pure-JAX reference ------------------------- #

def reference_forward(hidden, tgt_var, params, pad_id, div_by_word=False):
    B = tgt_var.shape[0]
    enc_flat = jnp.transpose(hidden, (1, 0, 2)).reshape(B, -1)
    h = enc_flat @ params["wb"] + params["bb"]
    emb = params["embed"][tgt_var[:, :-1]]
    gold = tgt_var[:, 1:]
    mask = (gold != pad_id).astype(jnp.float32)
    T = gold.shape[1]
    score = jnp.zeros((B,), jnp.float32)
    for t in range(T):
        x = emb[:, t]
        r = jax.nn.sigmoid(x @ params["wir"] + params["bir"] + h @ params["whr"] + params["bhr"])
        z = jax.nn.sigmoid(x @ params["wiz"] + params["biz"] + h @ params["whz"] + params["bhz"])
        n = jnp.tanh(x @ params["win"] + params["bin"] + r * (h @ params["whn"] + params["bhn"]))
        h = (1.0 - z) * n + z * h
        logits = h @ params["wout"] + params["bout"]
        logp = jax.nn.log_softmax(logits, axis=-1)
        score = score + logp[jnp.arange(B), gold[:, t]] * mask[:, t]
    if div_by_word:
        tgt_len = (tgt_var != pad_id).sum(-1).astype(jnp.float32)
        score = score / (tgt_len + 1e-9)
    return -jnp.sum(score)


# ----------------------------------- Main ----------------------------------- #

if __name__ == "__main__":
    # Small, forward-consistent sizes.
    B = 2                 # batch
    ENC_LAYERS = 1
    E = 16                # enc_hidden_dim
    H = 32                # dec_hidden_dim (dec_num_layers = 1)
    D = 16                # dec_embed_dim
    V = 64                # vocab size
    L = 17                # tgt sequence length (incl. SOS) -> T = 16 decode steps (2 chunks)
    PAD, SOS, EOS = 0, 1, 2

    key = jax.random.PRNGKey(0)
    ks = jax.random.split(key, 20)

    def init(k, shape, scale=0.1):
        return scale * jax.random.normal(k, shape, dtype=jnp.float32)

    params = {
        "embed": init(ks[0], (V, D)),
        # MLPBridger linear: (enc_layers*E) -> (dec_layers*H)
        "wb": init(ks[1], (ENC_LAYERS * E, H)),
        "bb": init(ks[2], (1, H)),
        # GRU input->hidden (gate order r, z, n), stored (in, out)
        "wir": init(ks[3], (D, H)), "wiz": init(ks[4], (D, H)), "win": init(ks[5], (D, H)),
        # GRU hidden->hidden
        "whr": init(ks[6], (H, H)), "whz": init(ks[7], (H, H)), "whn": init(ks[8], (H, H)),
        "bir": init(ks[9], (1, H)), "biz": init(ks[10], (1, H)), "bin": init(ks[11], (1, H)),
        "bhr": init(ks[12], (1, H)), "bhz": init(ks[13], (1, H)), "bhn": init(ks[14], (1, H)),
        # output projection hidden -> vocab (logsumexp done in kernel)
        "wout": init(ks[15], (H, V)),
        "bout": init(ks[16], (1, V)),
    }

    # Deterministic example inputs.
    hidden = init(ks[17], (ENC_LAYERS, B, E), scale=1.0)        # encoder hidden state
    tgt_var = jax.random.randint(ks[18], (B, L), 3, V, dtype=jnp.int32)
    tgt_var = tgt_var.at[:, 0].set(SOS)
    tgt_var = tgt_var.at[0, L - 1].set(EOS)
    tgt_var = tgt_var.at[1, L - 5].set(EOS)
    tgt_var = tgt_var.at[1, L - 4:].set(PAD)                    # exercise pad masking

    loss = jax.block_until_ready(
        rnn_predictor_forward(hidden, tgt_var, params, PAD, div_by_word=False)
    )
    ref = reference_forward(hidden, tgt_var, params, PAD, div_by_word=False)

    assert jnp.isfinite(loss), "kernel produced non-finite loss"
    err = abs(float(loss) - float(ref)) / (abs(float(ref)) + 1e-6)
    assert err < 1e-3, f"mismatch vs reference: {float(loss)} vs {float(ref)}"

    # TODO(synk): predict() greedy-decoding path (data-dependent token sampling loop)
    # is not implemented; only the teacher-forced score() path used by forward() is.

    print("KERNEL_OK")
</pallas_src>

<mosaic_0001>
module attributes {stable_mosaic.version = 11 : i64} {
  func.func @_input_proj_kernel(%arg0: i32, %arg1: memref<16x16xf32, #tpu.memory_space<vmem>>, %arg2: memref<16x96xf32, #tpu.memory_space<vmem>>, %arg3: memref<1x96xf32, #tpu.memory_space<vmem>>, %arg4: memref<16x96xf32, #tpu.memory_space<vmem>>) attributes {dimension_semantics = [#tpu.dimension_semantics<parallel>], iteration_bounds = array<i64: 2>, scalar_prefetch = 0 : i64, scratch_operands = 0 : i64, tpu.core_type = #tpu.core_type<tc>, window_params = [{transform_indices = @transform_0, window_bounds = array<i64: 16, 16>}, {pipeline_mode = #tpu.pipeline_mode<synchronous>, transform_indices = @transform_1, window_bounds = array<i64: 16, 96>}, {pipeline_mode = #tpu.pipeline_mode<synchronous>, transform_indices = @transform_2, window_bounds = array<i64: 1, 96>}, {transform_indices = @transform_3, window_bounds = array<i64: 16, 96>}]} {
    %c0 = arith.constant 0 : index
    %c0_0 = arith.constant 0 : index
    %0 = vector.load %arg1[%c0, %c0_0] : memref<16x16xf32, #tpu.memory_space<vmem>>, vector<16x16xf32>
    %c0_1 = arith.constant 0 : index
    %c0_2 = arith.constant 0 : index
    %1 = vector.load %arg2[%c0_1, %c0_2] : memref<16x96xf32, #tpu.memory_space<vmem>>, vector<16x96xf32>
    %cst = arith.constant dense<0.000000e+00> : vector<16x96xf32>
    %2 = tpu.matmul %0, %1, %cst {dimension_numbers = #tpu.dot_dimension_numbers<[1], [0], [0], [1], [0, 0, 1, 1], [], []>} : vector<16x16xf32>, vector<16x96xf32>, vector<16x96xf32> -> vector<16x96xf32>
    %c0_3 = arith.constant 0 : index
    %c0_4 = arith.constant 0 : index
    %3 = vector.load %arg3[%c0_3, %c0_4] : memref<1x96xf32, #tpu.memory_space<vmem>>, vector<1x96xf32>
    %4 = vector.broadcast %3 : vector<1x96xf32> to vector<16x96xf32>
    %5 = arith.addf %2, %4 : vector<16x96xf32>
    %c0_5 = arith.constant 0 : index
    %c0_6 = arith.constant 0 : index
    %6 = vector.load %arg4[%c0_5, %c0_6] : memref<16x96xf32, #tpu.memory_space<vmem>>, vector<16x96xf32>
    tpu.vector_store %arg4[%c0_5, %c0_6], %5 {strides = array<i32>} : memref<16x96xf32, #tpu.memory_space<vmem>>, vector<16x96xf32>,
    return
  }
  func.func @transform_0(%arg0: i32) -> (i32, i32) {
    %c0_i32 = arith.constant 0 : i32
    %c0_i32_0 = arith.constant 0 : i32
    return %arg0, %c0_i32 : i32, i32
  }
  func.func @transform_1(%arg0: i32) -> (i32, i32) {
    %c0_i32 = arith.constant 0 : i32
    %c0_i32_0 = arith.constant 0 : i32
    %c0_i32_1 = arith.constant 0 : i32
    return %c0_i32, %c0_i32_0 : i32, i32
  }
  func.func @transform_2(%arg0: i32) -> (i32, i32) {
    %c0_i32 = arith.constant 0 : i32
    %c0_i32_0 = arith.constant 0 : i32
    %c0_i32_1 = arith.constant 0 : i32
    return %c0_i32, %c0_i32_0 : i32, i32
  }
  func.func @transform_3(%arg0: i32) -> (i32, i32) {
    %c0_i32 = arith.constant 0 : i32
    %c0_i32_0 = arith.constant 0 : i32
    return %arg0, %c0_i32 : i32, i32
  }
}

</mosaic_0001>

<llo_original>
// kernel: tpu_custom_call.1
$region0: #{tpu_custom_call.1}
  #allocation0 [shape = 'u32[]', space=smem, size = 0x4, offset = 0x4, fixed_abs, tag = 'smem constant byte address 0x4 - core index']
  #allocation1 [shape = 'u32[144,128]{1,0:T(1,128)}', space=vmem, size = 0x12000, scoped, tag = 'internal scratch']
  %s0 = inlined_call_operand.vmem [shape: f32[32,16], index: 0, kind: input, shape index: {}]
  %s1 = inlined_call_operand.vmem [shape: f32[16,96], index: 1, kind: input, shape index: {}]
  %s2 = inlined_call_operand.vmem [shape: f32[1,96], index: 2, kind: input, shape index: {}]
  %s3 = inlined_call_operand.hbm [shape: f32[32,96], index: 3, kind: output, shape index: {}]
  %s4 = sld [smem:[#allocation0]]
  $region45: #{tpu_custom_call.1} parent=0
    _
  %s6 = ssub.s32 1, %s4
  %s7 = scalar_select 0, %s6, %s4
  $region1: #{tpu_custom_call.1} parent=0
    #allocation2 [shape = 'u8[16384]{0}', space=vmem, size = 0x4000, scoped, tag = 'output window, operand 0']
    #allocation3 [shape = 's32[2]{0}', space=sflag, size = 0x8, scoped, tag = 'scoped memory for tpu_custom_call.1']
    %8 = vsyncpa [#allocation3], 0
    %s9 = scalar_lea.sflag [#allocation3], 1
    %10 = vsyncpa %s9, 0
    loop: start=0, step=1, limit=4
    $region2: #{tpu_custom_call.1} parent=1 // loop_pre_header
      _
    $region3: #{tpu_custom_call.1} parent=1 // loop_header
      %s12 = sphi 0, %s16
      %p13 = scmp.ge.s32.totalorder %s12, 4
      %s22 = sphi 0, %s24
      %s25 = sphi 0, %s22
      %s26 = sphi 0, %s25
      %s42 = sphi 0, %s26
      %s46 = sphi 0, %s46
      %s48 = sphi 0, %s46
      %s49 = sphi 0, %s48
      %s63 = sphi 0, %s49
      %s67 = sphi 0, %s67
      %s69 = sphi 0, %s67
      %s70 = sphi 0, %s69
      %s84 = sphi 0, %s70
      %s90 = sphi 0, %s92
      %s93 = sphi 0, %s90
      %s94 = sphi 0, %s93
      %s110 = sphi 0, %s94
    $region4: #{tpu_custom_call.1} parent=1 // loop_header_branch
      %15 = sbr.rel (%p13) target = $region8
    $region5: #{tpu_custom_call.1} parent=1 // loop_body
      %s17 = ssub.s32 %s12, 1
      %s18 = ssub.s32 %s12, 2
      %s19 = sadd.s32 %s12, 1
      %s20 = ssub.s32 %s12, %s19
      %p21 = scmp.eq.s32.totalorder %s20, 0
      %s23 = sadd.s32 %s22, 1
      %s24 = scalar_select %p21, %s22, %s23
      %p27 = pneg %p21
      %p28 = scmp.eq.s32.totalorder %s12, 1
      %p29 = por %p27, %p28
      %p30 = scmp.ne.s32.totalorder %s22, %s25
      %p31 = scmp.eq.s32.totalorder %s12, 0
      %p32 = por %p30, %p31
      %p33 = scmp.ne.s32.totalorder %s22, %s25
      %p34 = scmp.eq.s32.totalorder %s17, 1
      %p35 = por %p33, %p34
      %p36 = scmp.ne.s32.totalorder %s25, %s26
      %p37 = scmp.eq.s32.totalorder %s17, 0
      %p38 = por %p36, %p37
      %p39 = scmp.ne.s32.totalorder %s25, %s26
      %p40 = scmp.eq.s32.totalorder %s18, 1
      %p41 = por %p39, %p40
      %p43 = scmp.ne.s32.totalorder %s26, %s42
      %p44 = scmp.eq.s32.totalorder %s18, 0
      %p45 = por %p43, %p44
      %s47 = sadd.s32 %s46, 1
      %p50 = scmp.eq.s32.totalorder %s12, 1
      %p51 = scmp.ne.s32.totalorder %s46, %s48
      %p52 = scmp.eq.s32.totalorder %s12, 0
      %p53 = por %p51, %p52
      %p54 = scmp.ne.s32.totalorder %s46, %s48
      %p55 = scmp.eq.s32.totalorder %s17, 1
      %p56 = por %p54, %p55
      %p57 = scmp.ne.s32.totalorder %s48, %s49
      %p58 = scmp.eq.s32.totalorder %s17, 0
      %p59 = por %p57, %p58
      %p60 = scmp.ne.s32.totalorder %s48, %s49
      %p61 = scmp.eq.s32.totalorder %s18, 1
      %p62 = por %p60, %p61
      %p64 = scmp.ne.s32.totalorder %s49, %s63
      %p65 = scmp.eq.s32.totalorder %s18, 0
      %p66 = por %p64, %p65
      %s68 = sadd.s32 %s67, 1
      %p71 = scmp.eq.s32.totalorder %s12, 1
      %p72 = scmp.ne.s32.totalorder %s67, %s69
      %p73 = scmp.eq.s32.totalorder %s12, 0
      %p74 = por %p72, %p73
      %p75 = scmp.ne.s32.totalorder %s67, %s69
      %p76 = scmp.eq.s32.totalorder %s17, 1
      %p77 = por %p75, %p76
      %p78 = scmp.ne.s32.totalorder %s69, %s70
      %p79 = scmp.eq.s32.totalorder %s17, 0
      %p80 = por %p78, %p79
      %p81 = scmp.ne.s32.totalorder %s69, %s70
      %p82 = scmp.eq.s32.totalorder %s18, 1
      %p83 = por %p81, %p82
      %p85 = scmp.ne.s32.totalorder %s70, %s84
      %p86 = scmp.eq.s32.totalorder %s18, 0
      %p87 = por %p85, %p86
      %s88 = ssub.s32 %s12, %s19
      %p89 = scmp.eq.s32.totalorder %s88, 0
      %s91 = sadd.s32 %s90, 1
      %s92 = scalar_select %p89, %s90, %s91
      %p95 = pneg %p89
      %p96 = scmp.eq.s32.totalorder %s12, 1
      %p97 = por %p95, %p96
      %p98 = scmp.ne.s32.totalorder %s90, %s93
      %p99 = scmp.eq.s32.totalorder %s12, 0
      %p100 = por %p98, %p99
      %p101 = scmp.ne.s32.totalorder %s90, %s93
      %p102 = scmp.eq.s32.totalorder %s17, 1
      %p103 = por %p101, %p102
      %p104 = scmp.ne.s32.totalorder %s93, %s94
      %p105 = scmp.eq.s32.totalorder %s17, 0
      %p106 = por %p104, %p105
      %p107 = scmp.ne.s32.totalorder %s93, %s94
      %p108 = scmp.eq.s32.totalorder %s18, 1
      %p109 = por %p107, %p108
      %p111 = scmp.ne.s32.totalorder %s94, %s110
      %p112 = scmp.eq.s32.totalorder %s18, 0
      %p113 = por %p111, %p112
      %p114 = scmp.le.s32.totalorder 1, %s12
      %p115 = scmp.lt.s32.totalorder %s12, 3
      %p116 = pnand %p114, %p115
      %p117 = pneg %p116
      // Predicated region
      $region9: #{tpu_custom_call.1} parent=5 // pred_check
        _
      $region10: #{tpu_custom_call.1} parent=5 // pred_check_branch
        %119 = sbr.rel (%p116) target = $region12
      $region11: #{tpu_custom_call.1} parent=5 // pred_region
        %s120 = ssub.s32 %s12, 1
        // Predicated region
        $region13: #{tpu_custom_call.1} parent=11 // pred_check
          %p121 = pneg %p59
        $region14: #{tpu_custom_call.1} parent=11 // pred_check_branch
          %123 = sbr.rel (%p121) target = $region16
        $region15: #{tpu_custom_call.1} parent=11 // pred_region
          _
        $region16: #{tpu_custom_call.1} parent=11 // pred_fallthru
          _
        // Predicated region
        $region17: #{tpu_custom_call.1} parent=11 // pred_check
          %p124 = pneg %p80
        $region18: #{tpu_custom_call.1} parent=11 // pred_check_branch
          %126 = sbr.rel (%p124) target = $region20
        $region19: #{tpu_custom_call.1} parent=11 // pred_region
          _
        $region20: #{tpu_custom_call.1} parent=11 // pred_fallthru
          _
      $region12: #{tpu_custom_call.1} parent=5 // pred_fallthru
        _
      %p127 = scmp.lt.s32.totalorder %s12, 2
      // Predicated region
      $region21: #{tpu_custom_call.1} parent=5 // pred_check
        %p128 = pneg %p127
      $region22: #{tpu_custom_call.1} parent=5 // pred_check_branch
        %130 = sbr.rel (%p128) target = $region24
      $region23: #{tpu_custom_call.1} parent=5 // pred_region
        // Predicated region
        $region25: #{tpu_custom_call.1} parent=23 // pred_check
          %p131 = pneg %p32
        $region26: #{tpu_custom_call.1} parent=23 // pred_check_branch
          %133 = sbr.rel (%p131) target = $region28
        $region27: #{tpu_custom_call.1} parent=23 // pred_region
          %s134 = smul.u32 2, %s12
          %p135 = scmp.lt.s32.totalorder %s134, 3
          %s136 = scalar_select %p135, %s134, 3
          %s137 = smul.addr %s136, 8
          %s138 = scalar_lea.vmem %s0, %s137
          %s139 = smul.u32 2, %s12
        $region28: #{tpu_custom_call.1} parent=23 // pred_fallthru
          _
      $region24: #{tpu_custom_call.1} parent=5 // pred_fallthru
        _
      %p140 = scmp.le.s32.totalorder 1, %s12
      %p141 = scmp.lt.s32.totalorder %s12, 3
      %p142 = pnand %p140, %p141
      %p143 = pneg %p142
      // Predicated region
      $region29: #{tpu_custom_call.1} parent=5 // pred_check
        _
      $region30: #{tpu_custom_call.1} parent=5 // pred_check_branch
        %145 = sbr.rel (%p142) target = $region32
      $region31: #{tpu_custom_call.1} parent=5 // pred_region
        %s146 = ssub.s32 %s12, 1
        %s147 = smul.u32 2, %s17
        %p148 = scmp.lt.s32.totalorder %s147, 3
        %s149 = scalar_select %p148, %s147, 3
        %s150 = smul.addr %s149, 8
        %s151 = scalar_lea.vmem %s0, %s150
        %p152 = pneg %p38
        %p153 = pneg %p35
        %p154 = pneg %p59
        %p155 = pneg %p56
        %p156 = pneg %p80
        %p157 = pneg %p77
        %p158 = pneg %p106
        %p159 = pneg %p103
        %s160 = sand.u32 %s93, 1
        %s161 = scalar_lea.sflag [#allocation3], %s160
        %s162 = sand.u32 %s93, 1
        %s163 = smul.addr %s162, 16
        %s164 = scalar_lea.vmem [#allocation2], %s163
        %s165 = smul.u32 2, %s17
        %p166 = scmp.lt.s32.totalorder %s165, 3
        %s167 = scalar_select %p166, %s165, 3
        %s168 = smul.addr %s167, 8
        %s169 = scalar_lea.vmem %s0, %s168
        %s170 = smul.u32 2, %s17
        %s171 = smul.u32 2, %s17
        %v172 = vld [vmem:[%s169] sm:$0xff]
        %v173 = vld [vmem:[%s169 + $0x8] sm:$0xff]
        %v174 = vld [vmem:[%s1] sm:$0xff]
        %v175 = vld [vmem:[%s1 + $0x8] sm:$0xff]
        %v176 = vld [vmem:[%s2] sm:$0x1]
        %v178 = vlaneseq
        %v179 = vshrl.u32 %v178, 7
        %v180 = vsub.s32 0, %v179
        %v181 = vrot.slane %v176, %v180
        %vm183 = vcmask 130048
        %v185 = vsel %vm183, %v172, 0
        %v188 = vsel %vm183, %v173, 0
        %190 = vmatprep.subr.mxu0 0.0
        %191 = vmatpush1.msra.mxu0 %v174
        %192 = vmatprep.subr.mxu0 0.0
        %193 = vmatpush1.msra.mxu0 %v175
        %194 = vmatprep.subr.mxu0 0.0
        %195 = vmatpush1.msra.mxu0 0.0
        %196 = vmatprep.subr.mxu0 0.0
        %197 = vmatpush1.msra.mxu0 0.0
        %198 = vmatprep.subr.mxu0 0.0
        %199 = vmatpush1.msra.mxu0 0.0
        %200 = vmatprep.subr.mxu0 0.0
        %201 = vmatpush1.msra.mxu0 0.0
        %202 = vmatprep.subr.mxu0 0.0
        %203 = vmatpush1.msra.mxu0 0.0
        %204 = vmatprep.subr.mxu0 0.0
        %205 = vmatpush1.msra.mxu0 0.0
        %206 = vmatprep.subr.mxu0 0.0
        %207 = vmatpush1.msra.mxu0 0.0
        %208 = vmatprep.subr.mxu0 0.0
        %209 = vmatpush1.msra.mxu0 0.0
        %210 = vmatprep.subr.mxu0 0.0
        %211 = vmatpush1.msra.mxu0 0.0
        %212 = vmatprep.subr.mxu0 0.0
        %213 = vmatpush1.msra.mxu0 0.0
        %214 = vmatprep.subr.mxu0 0.0
        %215 = vmatpush1.msra.mxu0 0.0
        %216 = vmatprep.subr.mxu0 0.0
        %217 = vmatpush1.msra.mxu0 0.0
        %218 = vmatprep.subr.mxu0 0.0
        %219 = vmatpush1.msra.mxu0 0.0
        %220 = vmatprep.subr.mxu0 0.0
        %221 = vmatpush1.msra.mxu0 0.0
        %222 = vmatprep.subr.mxu0 0.0
        %223 = vmatpush1.msra.mxu0 0.0
        %224 = vmatprep.subr.mxu0 0.0
        %225 = vmatpush1.msra.mxu0 0.0
        %226 = vmatprep.subr.mxu0 0.0
        %227 = vmatpush1.msra.mxu0 0.0
        %228 = vmatprep.subr.mxu0 0.0
        %229 = vmatpush1.msra.mxu0 0.0
        %230 = vmatprep.subr.mxu0 0.0
        %231 = vmatpush1.msra.mxu0 0.0
        %232 = vmatprep.subr.mxu0 0.0
        %233 = vmatpush1.msra.mxu0 0.0
        %234 = vmatprep.subr.mxu0 0.0
        %235 = vmatpush1.msra.mxu0 0.0
        %236 = vmatprep.subr.mxu0 0.0
        %237 = vmatpush1.msra.mxu0 0.0
        %238 = vmatprep.subr.mxu0 0.0
        %239 = vmatpush1.msra.mxu0 0.0
        %240 = vmatprep.subr.mxu0 0.0
        %241 = vmatpush1.msra.mxu0 0.0
        %242 = vmatprep.subr.mxu0 0.0
        %243 = vmatpush1.msra.mxu0 0.0
        %244 = vmatprep.subr.mxu0 0.0
        %245 = vmatpush1.msra.mxu0 0.0
        %246 = vmatprep.subr.mxu0 0.0
        %247 = vmatpush1.msra.mxu0 0.0
        %248 = vmatprep.subr.mxu0 0.0
        %249 = vmatpush1.msra.mxu0 0.0
        %250 = vmatprep.subr.mxu0 0.0
        %251 = vmatpush1.msra.mxu0 0.0
        %252 = vmatprep.subr.mxu0 0.0
        %253 = vmatpush1.msra.mxu0 0.0
        %254 = vmatprep.mubr.f32.mxu0 0.0
        %255 = vmatmul.mubr.f32.gmra.mrb[0].mxu0 %v185
        %v256 = vpop.f32.mrb[0].mxu0
        %v257 = vadd.f32 %v181, %v256
        %v258 = vpop.f32.mrb[0].mxu0
        %259 = vmatprep.mubr.f32.mxu0 0.0
        %260 = vmatmul.mubr.f32.gmra.mrb[0].mxu0 %v188
        %v261 = vpop.f32.mrb[0].mxu0
        %v262 = vadd.f32 %v181, %v261
        %v263 = vpop.f32.mrb[0].mxu0
        %264 = vdwg.mxu0
        %vm265 = vcmask 785408
        %266 = vst.msk [vmem:[%s164] sm:$0xff] %vm265, %v257
        %267 = vst.msk [vmem:[%s164 + $0x8] sm:$0xff] %vm265, %v262
        %s268 = sand.u32 %s93, 1
        %s269 = scalar_lea.sflag [#allocation3], %s268
        %s270 = sand.u32 %s93, 1
        %s271 = smul.addr %s270, 16
        %s272 = scalar_lea.vmem [#allocation2], %s271
        // Predicated region
        $region33: #{tpu_custom_call.1} parent=31 // pred_check
          %p273 = pneg %p103
        $region34: #{tpu_custom_call.1} parent=31 // pred_check_branch
          %275 = sbr.rel (%p273) target = $region36
        $region35: #{tpu_custom_call.1} parent=31 // pred_region
          %s276 = smul.u32 2, %s17
          %s278 = ssub.s32 256, 256
          %279 = vsyncadd %s269, %s278
          %s280 = smul.addr %s276, 128
          %s281 = scalar_lea.hbm %s3, %s280
          %s282 = sshll.u32 %s272, 4
          %s283 = int_to_ptr.vmem [resolvable:$true] %s282
          %288 = dma.vmem_to_hbm [thread:$0]  %s283, 256, %s281, %s269, 128, 128, 8
        $region36: #{tpu_custom_call.1} parent=31 // pred_fallthru
          _
      $region32: #{tpu_custom_call.1} parent=5 // pred_fallthru
        _
      %p289 = scmp.le.s32.totalorder 2, %s12
      // Predicated region
      $region37: #{tpu_custom_call.1} parent=5 // pred_check
        %p290 = pneg %p289
      $region38: #{tpu_custom_call.1} parent=5 // pred_check_branch
        %292 = sbr.rel (%p290) target = $region40
      $region39: #{tpu_custom_call.1} parent=5 // pred_region
        %s293 = ssub.s32 %s12, 2
        // Predicated region
        $region41: #{tpu_custom_call.1} parent=39 // pred_check
          %p294 = pneg %p109
        $region42: #{tpu_custom_call.1} parent=39 // pred_check_branch
          %296 = sbr.rel (%p294) target = $region44
        $region43: #{tpu_custom_call.1} parent=39 // pred_region
          %s297 = sand.u32 %s94, 1
          %s298 = scalar_lea.sflag [#allocation3], %s297
          %s299 = sand.u32 %s94, 1
          %s300 = smul.addr %s299, 16
          %s301 = scalar_lea.vmem [#allocation2], %s300
          %302 = dma.done %s298, 256
        $region44: #{tpu_custom_call.1} parent=39 // pred_fallthru
          _
      $region40: #{tpu_custom_call.1} parent=5 // pred_fallthru
        _
    $region6: #{tpu_custom_call.1} parent=1 // loop_footer
      %s16 = sadd.s32 1, %s12
    $region7: #{tpu_custom_call.1} parent=1 // loop_footer_branch
      %11 = sbr.rel target = $region3
    $region8: #{tpu_custom_call.1} parent=1 // loop_exit
      _
    %303 = vsyncpa [#allocation3], 1
    %s304 = scalar_lea.sflag [#allocation3], 1
    %305 = vsyncpa %s304, 1

</llo_original>
